<compile_context>
chip_gen: v5e
topology: v5e:2x2
jax: 0.10.0
libtpu: 0.0.40
codegen_flags: <defaults>
</compile_context>

<pallas_src>
import functools
import math

import jax
import jax.numpy as jnp
from jax import lax
from jax.experimental import pallas as pl
from jax.experimental.pallas import tpu as pltpu

_LANES_WIDE = 1024        # last dim of the 2D slab (multiple of 128 -> unmasked vst)
_MAX_BLOCK_ROWS = 512     # 512 x 1024 f32 = 2 MiB per block (safe for v7x VMEM)


def _hash32(x):
    # "lowbias32" mixer: uint32 -> well-mixed uint32. Pure VPU ops.
    x = x ^ (x >> 16)
    x = x * jnp.uint32(0x7FEB352D)
    x = x ^ (x >> 15)
    x = x * jnp.uint32(0x846CA68B)
    x = x ^ (x >> 16)
    return x


def _gaussian_noise_kernel(seed_ref, x_ref, o_ref, *, std):
    # TODO(synk): on real TPU the hardware PRNG (pltpu.prng_seed/prng_random_bits)
    # would be cheaper, but it has no interpret/CPU lowering, so we use a
    # counter-based hash PRNG that lowers on every backend.
    rows, cols = x_ref.shape
    half = cols // 2

    # Unique counter per Box-Muller pair: global row index * half + lane.
    # program_id gives each grid tile its own stream (no repeated noise).
    row0 = pl.program_id(0) * rows
    r_iota = lax.broadcasted_iota(jnp.int32, (rows, half), 0)
    c_iota = lax.broadcasted_iota(jnp.int32, (rows, half), 1)
    idx = ((row0 + r_iota) * half + c_iota).astype(jnp.uint32)

    seed = seed_ref[0].astype(jnp.uint32)
    bits1 = _hash32(idx ^ (seed * jnp.uint32(0x9E3779B9) + jnp.uint32(0x85EBCA6B)))
    bits2 = _hash32(bits1 + (seed ^ jnp.uint32(0xC2B2AE35)))

    # 23 high bits -> uniforms. u1 in (0, 1] so log() is finite.
    inv23 = jnp.float32(1.0 / (1 << 23))
    u1 = ((bits1 >> 9).astype(jnp.int32).astype(jnp.float32) + 1.0) * inv23
    u2 = (bits2 >> 9).astype(jnp.int32).astype(jnp.float32) * inv23

    # Box-Muller; both outputs used, written to the two lane-halves of the block.
    r = jnp.sqrt(-2.0 * jnp.log(u1))
    theta = jnp.float32(2.0 * math.pi) * u2
    z = jnp.concatenate([r * jnp.cos(theta), r * jnp.sin(theta)], axis=-1)

    x = x_ref[...].astype(jnp.float32)
    o_ref[...] = (x + jnp.float32(std) * z).astype(o_ref.dtype)


def gaussian_noise(x, std, seed=0):
    """Pallas equivalent of GaussianNoise.forward: x + Normal(0, std)."""
    orig_shape = x.shape
    dtype = x.dtype

    flat = x.reshape(-1)                 # keep native dtype through HBM
    n = flat.shape[0]

    rows = -(-n // _LANES_WIDE)          # ceil
    if rows >= _MAX_BLOCK_ROWS:
        block_rows = _MAX_BLOCK_ROWS
        rows = -(-rows // _MAX_BLOCK_ROWS) * _MAX_BLOCK_ROWS
    else:
        rows = -(-rows // 8) * 8         # sublane multiple
        block_rows = rows

    total = rows * _LANES_WIDE
    if total != n:
        flat = jnp.pad(flat, (0, total - n))
    x2d = flat.reshape(rows, _LANES_WIDE)

    grid = (rows // block_rows,)
    seed_arr = jnp.array([seed], dtype=jnp.int32)

    out2d = pl.pallas_call(
        functools.partial(_gaussian_noise_kernel, std=float(std)),
        out_shape=jax.ShapeDtypeStruct((rows, _LANES_WIDE), dtype),
        grid_spec=pltpu.PrefetchScalarGridSpec(
            num_scalar_prefetch=1,
            grid=grid,
            in_specs=[pl.BlockSpec((block_rows, _LANES_WIDE),
                                   lambda i, seed_ref: (i, 0))],
            out_specs=pl.BlockSpec((block_rows, _LANES_WIDE),
                                   lambda i, seed_ref: (i, 0)),
        ),
        compiler_params=pltpu.CompilerParams(
            dimension_semantics=("parallel",)),
    )(seed_arr, x2d)

    return out2d.reshape(-1)[:n].reshape(orig_shape)


if __name__ == "__main__":
    key = jax.random.PRNGKey(0)
    # Small NCHW-like input consistent with a conv-pipeline prior module.
    x = jax.random.normal(key, (2, 4, 16, 16), dtype=jnp.float32)
    std = 0.1

    y = gaussian_noise(x, std, seed=0)
    y = jax.block_until_ready(y)

    assert y.shape == x.shape and y.dtype == x.dtype
    # Sanity: the additive noise should have roughly the requested std & ~0 mean.
    noise = y - x
    noise_std = float(jnp.std(noise))
    noise_mean = float(jnp.mean(noise))
    assert 0.5 * std < noise_std < 2.0 * std, noise_std
    assert abs(noise_mean) < 0.5 * std, noise_mean

    print("KERNEL_OK")
</pallas_src>

<mosaic_0001>
module attributes {stable_mosaic.version = 11 : i64} {
  func.func @_gaussian_noise_kernel(%arg0: i32, %arg1: memref<1xi32, #tpu.memory_space<smem>>, %arg2: memref<8x1024xf32, #tpu.memory_space<vmem>>, %arg3: memref<8x1024xf32, #tpu.memory_space<vmem>>) attributes {dimension_semantics = [#tpu.dimension_semantics<parallel>], iteration_bounds = array<i64: 1>, scalar_prefetch = 1 : i64, scratch_operands = 0 : i64, tpu.core_type = #tpu.core_type<tc>, window_params = [{transform_indices = @transform_0, window_bounds = array<i64: 8, 1024>}, {transform_indices = @transform_1, window_bounds = array<i64: 8, 1024>}]} {
    %c8_i32 = arith.constant 8 : i32
    %0 = arith.muli %arg0, %c8_i32 : i32
    %1 = tpu.iota {dimensions = array<i32: 0>} : vector<8x512xi32>
    %2 = tpu.iota {dimensions = array<i32: 1>} : vector<8x512xi32>
    %3 = vector.broadcast %0 : i32 to vector<8x512xi32>
    %4 = arith.addi %3, %1 : vector<8x512xi32>
    %c512_i32 = arith.constant 512 : i32
    %5 = vector.broadcast %c512_i32 : i32 to vector<8x512xi32>
    %6 = arith.muli %4, %5 : vector<8x512xi32>
    %7 = arith.addi %6, %2 : vector<8x512xi32>
    %c0 = arith.constant 0 : index
    %8 = memref.load %arg1[%c0] : memref<1xi32, #tpu.memory_space<smem>>
    %c-1640531527_i32 = arith.constant -1640531527 : i32
    %9 = arith.muli %8, %c-1640531527_i32 : i32
    %c-2048144789_i32 = arith.constant -2048144789 : i32
    %10 = arith.addi %9, %c-2048144789_i32 : i32
    %11 = vector.broadcast %10 : i32 to vector<8x512xi32>
    %12 = arith.xori %7, %11 : vector<8x512xi32>
    %c16_i32 = arith.constant 16 : i32
    %13 = vector.broadcast %c16_i32 : i32 to vector<8x512xi32>
    %14 = arith.shrui %12, %13 : vector<8x512xi32>
    %15 = arith.xori %12, %14 : vector<8x512xi32>
    %c2146121005_i32 = arith.constant 2146121005 : i32
    %16 = vector.broadcast %c2146121005_i32 : i32 to vector<8x512xi32>
    %17 = arith.muli %15, %16 : vector<8x512xi32>
    %c15_i32 = arith.constant 15 : i32
    %18 = vector.broadcast %c15_i32 : i32 to vector<8x512xi32>
    %19 = arith.shrui %17, %18 : vector<8x512xi32>
    %20 = arith.xori %17, %19 : vector<8x512xi32>
    %c-2073254261_i32 = arith.constant -2073254261 : i32
    %21 = vector.broadcast %c-2073254261_i32 : i32 to vector<8x512xi32>
    %22 = arith.muli %20, %21 : vector<8x512xi32>
    %c16_i32_0 = arith.constant 16 : i32
    %23 = vector.broadcast %c16_i32_0 : i32 to vector<8x512xi32>
    %24 = arith.shrui %22, %23 : vector<8x512xi32>
    %25 = arith.xori %22, %24 : vector<8x512xi32>
    %c-1028477387_i32 = arith.constant -1028477387 : i32
    %26 = arith.xori %8, %c-1028477387_i32 : i32
    %27 = vector.broadcast %26 : i32 to vector<8x512xi32>
    %28 = arith.addi %25, %27 : vector<8x512xi32>
    %c16_i32_1 = arith.constant 16 : i32
    %29 = vector.broadcast %c16_i32_1 : i32 to vector<8x512xi32>
    %30 = arith.shrui %28, %29 : vector<8x512xi32>
    %31 = arith.xori %28, %30 : vector<8x512xi32>
    %c2146121005_i32_2 = arith.constant 2146121005 : i32
    %32 = vector.broadcast %c2146121005_i32_2 : i32 to vector<8x512xi32>
    %33 = arith.muli %31, %32 : vector<8x512xi32>
    %c15_i32_3 = arith.constant 15 : i32
    %34 = vector.broadcast %c15_i32_3 : i32 to vector<8x512xi32>
    %35 = arith.shrui %33, %34 : vector<8x512xi32>
    %36 = arith.xori %33, %35 : vector<8x512xi32>
    %c-2073254261_i32_4 = arith.constant -2073254261 : i32
    %37 = vector.broadcast %c-2073254261_i32_4 : i32 to vector<8x512xi32>
    %38 = arith.muli %36, %37 : vector<8x512xi32>
    %c16_i32_5 = arith.constant 16 : i32
    %39 = vector.broadcast %c16_i32_5 : i32 to vector<8x512xi32>
    %40 = arith.shrui %38, %39 : vector<8x512xi32>
    %41 = arith.xori %38, %40 : vector<8x512xi32>
    %c9_i32 = arith.constant 9 : i32
    %42 = vector.broadcast %c9_i32 : i32 to vector<8x512xi32>
    %43 = arith.shrui %25, %42 : vector<8x512xi32>
    %44 = arith.sitofp %43 : vector<8x512xi32> to vector<8x512xf32>
    %cst = arith.constant 1.000000e+00 : f32
    %45 = vector.broadcast %cst : f32 to vector<8x512xf32>
    %46 = arith.addf %44, %45 : vector<8x512xf32>
    %cst_6 = arith.constant 1.1920929E-7 : f32
    %47 = vector.broadcast %cst_6 : f32 to vector<8x512xf32>
    %48 = arith.mulf %46, %47 : vector<8x512xf32>
    %c9_i32_7 = arith.constant 9 : i32
    %49 = vector.broadcast %c9_i32_7 : i32 to vector<8x512xi32>
    %50 = arith.shrui %41, %49 : vector<8x512xi32>
    %51 = arith.sitofp %50 : vector<8x512xi32> to vector<8x512xf32>
    %cst_8 = arith.constant 1.1920929E-7 : f32
    %52 = vector.broadcast %cst_8 : f32 to vector<8x512xf32>
    %53 = arith.mulf %51, %52 : vector<8x512xf32>
    %54 = math.log %48 : vector<8x512xf32>
    %cst_9 = arith.constant -2.000000e+00 : f32
    %55 = vector.broadcast %cst_9 : f32 to vector<8x512xf32>
    %56 = arith.mulf %55, %54 : vector<8x512xf32>
    %57 = math.sqrt %56 : vector<8x512xf32>
    %cst_10 = arith.constant 6.28318548 : f32
    %58 = vector.broadcast %cst_10 : f32 to vector<8x512xf32>
    %59 = arith.mulf %58, %53 : vector<8x512xf32>
    %60 = math.cos %59 : vector<8x512xf32>
    %61 = arith.mulf %57, %60 : vector<8x512xf32>
    %62 = math.sin %59 : vector<8x512xf32>
    %63 = arith.mulf %57, %62 : vector<8x512xf32>
    %64 = tpu.concatenate %61, %63 in 1 : vector<8x512xf32>, vector<8x512xf32> -> vector<8x1024xf32>
    %c0_11 = arith.constant 0 : index
    %c0_12 = arith.constant 0 : index
    %65 = vector.load %arg2[%c0_11, %c0_12] : memref<8x1024xf32, #tpu.memory_space<vmem>>, vector<8x1024xf32>
    %cst_13 = arith.constant 1.000000e-01 : f32
    %66 = vector.broadcast %cst_13 : f32 to vector<8x1024xf32>
    %67 = arith.mulf %66, %64 : vector<8x1024xf32>
    %68 = arith.addf %65, %67 : vector<8x1024xf32>
    %c0_14 = arith.constant 0 : index
    %c0_15 = arith.constant 0 : index
    %69 = vector.load %arg3[%c0_14, %c0_15] : memref<8x1024xf32, #tpu.memory_space<vmem>>, vector<8x1024xf32>
    tpu.vector_store %arg3[%c0_14, %c0_15], %68 {strides = array<i32>} : memref<8x1024xf32, #tpu.memory_space<vmem>>, vector<8x1024xf32>,
    return
  }
  func.func @transform_0(%arg0: i32, %arg1: memref<1xi32, #tpu.memory_space<smem>>) -> (i32, i32) {
    %c0_i32 = arith.constant 0 : i32
    %c0_i32_0 = arith.constant 0 : i32
    return %arg0, %c0_i32 : i32, i32
  }
  func.func @transform_1(%arg0: i32, %arg1: memref<1xi32, #tpu.memory_space<smem>>) -> (i32, i32) {
    %c0_i32 = arith.constant 0 : i32
    %c0_i32_0 = arith.constant 0 : i32
    return %arg0, %c0_i32 : i32, i32
  }
}

</mosaic_0001>

<llo_original>
// kernel: tpu_custom_call.1
$region0: #{tpu_custom_call.1}
  #allocation0 [shape = 'u32[]', space=smem, size = 0x4, offset = 0x4, fixed_abs, tag = 'smem constant byte address 0x4 - core index']
  #allocation1 [shape = 'u32[72,128]{1,0:T(1,128)}', space=vmem, size = 0x9000, scoped, tag = 'internal scratch']
  #allocation2 [shape = 's32[1]{0}', space=sflag, size = 0x4, scoped, tag = 'scoped memory for tpu_custom_call.1']
  #allocation3 [shape = 's32[1]{0:T(128)S(6)}', space=smem, size = 0x200, scoped, tag = 'prefetched SMEM operand 0']
  %s0 = inlined_call_operand.<no memory space> [shape: s32[1], index: 0, kind: input, shape index: {}]
  %s1 = inlined_call_operand.hbm [shape: f32[8,1024], index: 1, kind: input, shape index: {}]
  %s2 = inlined_call_operand.hbm [shape: f32[8,1024], index: 2, kind: output, shape index: {}]
  %s3 = sld [smem:[#allocation0]]
  $region18: #{tpu_custom_call.1} parent=0
    _
  %s5 = ssub.s32 1, %s3
  %s6 = scalar_select 0, %s5, %s3
  %7 = sst [smem:[#allocation3]] %s0
  $region1: #{tpu_custom_call.1} parent=0
    #allocation4 [shape = 'u8[32768]{0}', space=vmem, size = 0x8000, scoped, tag = 'input window, operand 1, single buffered']
    #allocation5 [shape = 's32[1]{0}', space=sflag, size = 0x4, scoped, tag = 'scoped memory for tpu_custom_call.1']
    #allocation6 [shape = 's32[1]{0}', space=sflag, size = 0x4, scoped, tag = 'scoped memory for tpu_custom_call.1']
    #allocation7 [shape = 'u8[32768]{0}', space=vmem, size = 0x8000, scoped, tag = 'output window, operand 0, single buffered']
    %8 = vsyncpa [#allocation5], 0
    %9 = vsyncpa [#allocation6], 0
    // Predicated region
    $region2: #{tpu_custom_call.1} parent=1 // pred_check
      _
    $region3: #{tpu_custom_call.1} parent=1 // pred_check_branch
      %11 = sbr.rel (0) target = $region5
    $region4: #{tpu_custom_call.1} parent=1 // pred_region
      %13 = vsyncadd [#allocation5], 0
      %s15 = sshll.u32 %s1, 4
      %s16 = int_to_ptr.hbm [resolvable:$true] %s15
      %s17 = sshll.u32 [#allocation4], 4
      %s18 = int_to_ptr.vmem [resolvable:$true] %s17
      %20 = dma.hbm_to_vmem [thread:$0]  %s16, 1024, %s18, [#allocation5]
    $region5: #{tpu_custom_call.1} parent=1 // pred_fallthru
      _
    // Predicated region
    $region6: #{tpu_custom_call.1} parent=1 // pred_check
      _
    $region7: #{tpu_custom_call.1} parent=1 // pred_check_branch
      %22 = sbr.rel (0) target = $region9
    $region8: #{tpu_custom_call.1} parent=1 // pred_region
      %24 = dma.done [#allocation5], 1024
    $region9: #{tpu_custom_call.1} parent=1 // pred_fallthru
      _
    %s25 = smul.u32 0, 8
    %v26 = vlaneseq
    %v27 = vshrl.u32 %v26, 7
    %v28 = vlaneseq
    %v29 = vand.u32 %v28, 127
    %v30 = vadd.s32 %v29, 128
    %v31 = vadd.s32 %v29, 256
    %v32 = vadd.s32 %v29, 384
    %v33 = vstv %s25
    %v34 = vadd.s32 %v33, %v27
    %v35 = vmul.u32 %v34, 512
    %v36 = vadd.s32 %v35, %v29
    %v37 = vadd.s32 %v35, %v30
    %v38 = vadd.s32 %v35, %v31
    %v39 = vadd.s32 %v35, %v32
    %s40 = sld [smem:[#allocation3]]
    %s41 = smul.u32 %s40, 2654435769
    %s42 = sadd.s32 %s41, 2246822507
    %v43 = vstv %s42
    %v44 = vxor.u32 %v36, %v43
    %v45 = vxor.u32 %v37, %v43
    %v46 = vxor.u32 %v38, %v43
    %v47 = vxor.u32 %v39, %v43
    %v48 = vshrl.u32 %v44, 16
    %v49 = vshrl.u32 %v45, 16
    %v50 = vshrl.u32 %v46, 16
    %v51 = vshrl.u32 %v47, 16
    %v52 = vxor.u32 %v44, %v48
    %v53 = vxor.u32 %v45, %v49
    %v54 = vxor.u32 %v46, %v50
    %v55 = vxor.u32 %v47, %v51
    %v56 = vmul.u32 %v52, 2146121005
    %v57 = vmul.u32 %v53, 2146121005
    %v58 = vmul.u32 %v54, 2146121005
    %v59 = vmul.u32 %v55, 2146121005
    %v60 = vshrl.u32 %v56, 15
    %v61 = vshrl.u32 %v57, 15
    %v62 = vshrl.u32 %v58, 15
    %v63 = vshrl.u32 %v59, 15
    %v64 = vxor.u32 %v56, %v60
    %v65 = vxor.u32 %v57, %v61
    %v66 = vxor.u32 %v58, %v62
    %v67 = vxor.u32 %v59, %v63
    %v68 = vmul.u32 %v64, 2221713035
    %v69 = vmul.u32 %v65, 2221713035
    %v70 = vmul.u32 %v66, 2221713035
    %v71 = vmul.u32 %v67, 2221713035
    %v72 = vshrl.u32 %v68, 16
    %v73 = vshrl.u32 %v69, 16
    %v74 = vshrl.u32 %v70, 16
    %v75 = vshrl.u32 %v71, 16
    %v76 = vxor.u32 %v68, %v72
    %v77 = vxor.u32 %v69, %v73
    %v78 = vxor.u32 %v70, %v74
    %v79 = vxor.u32 %v71, %v75
    %s80 = sxor.u32 %s40, 3266489909
    %v81 = vstv %s80
    %v82 = vadd.s32 %v76, %v81
    %v83 = vadd.s32 %v77, %v81
    %v84 = vadd.s32 %v78, %v81
    %v85 = vadd.s32 %v79, %v81
    %v86 = vshrl.u32 %v82, 16
    %v87 = vshrl.u32 %v83, 16
    %v88 = vshrl.u32 %v84, 16
    %v89 = vshrl.u32 %v85, 16
    %v90 = vxor.u32 %v82, %v86
    %v91 = vxor.u32 %v83, %v87
    %v92 = vxor.u32 %v84, %v88
    %v93 = vxor.u32 %v85, %v89
    %v94 = vmul.u32 %v90, 2146121005
    %v95 = vmul.u32 %v91, 2146121005
    %v96 = vmul.u32 %v92, 2146121005
    %v97 = vmul.u32 %v93, 2146121005
    %v98 = vshrl.u32 %v94, 15
    %v99 = vshrl.u32 %v95, 15
    %v100 = vshrl.u32 %v96, 15
    %v101 = vshrl.u32 %v97, 15
    %v102 = vxor.u32 %v94, %v98
    %v103 = vxor.u32 %v95, %v99
    %v104 = vxor.u32 %v96, %v100
    %v105 = vxor.u32 %v97, %v101
    %v106 = vmul.u32 %v102, 2221713035
    %v107 = vmul.u32 %v103, 2221713035
    %v108 = vmul.u32 %v104, 2221713035
    %v109 = vmul.u32 %v105, 2221713035
    %v110 = vshrl.u32 %v106, 16
    %v111 = vshrl.u32 %v107, 16
    %v112 = vshrl.u32 %v108, 16
    %v113 = vshrl.u32 %v109, 16
    %v114 = vxor.u32 %v106, %v110
    %v115 = vxor.u32 %v107, %v111
    %v116 = vxor.u32 %v108, %v112
    %v117 = vxor.u32 %v109, %v113
    %v118 = vshrl.u32 %v76, 9
    %v119 = vshrl.u32 %v77, 9
    %v120 = vshrl.u32 %v78, 9
    %v121 = vshrl.u32 %v79, 9
    %v122 = vcvt.s32.f32 %v118
    %v123 = vcvt.s32.f32 %v119
    %v124 = vcvt.s32.f32 %v120
    %v125 = vcvt.s32.f32 %v121
    %v126 = vadd.f32 %v122, 1.0
    %v127 = vadd.f32 %v123, 1.0
    %v128 = vadd.f32 %v124, 1.0
    %v129 = vadd.f32 %v125, 1.0
    %v130 = vmul.f32 %v126, 1.1920929e-07
    %v131 = vmul.f32 %v127, 1.1920929e-07
    %v132 = vmul.f32 %v128, 1.1920929e-07
    %v133 = vmul.f32 %v129, 1.1920929e-07
    %v134 = vshrl.u32 %v114, 9
    %v135 = vshrl.u32 %v115, 9
    %v136 = vshrl.u32 %v116, 9
    %v137 = vshrl.u32 %v117, 9
    %v138 = vcvt.s32.f32 %v134
    %v139 = vcvt.s32.f32 %v135
    %v140 = vcvt.s32.f32 %v136
    %v141 = vcvt.s32.f32 %v137
    %v142 = vmul.f32 %v138, 1.1920929e-07
    %v143 = vmul.f32 %v139, 1.1920929e-07
    %v144 = vmul.f32 %v140, 1.1920929e-07
    %v145 = vmul.f32 %v141, 1.1920929e-07
    %v146 = vlog2.pop %v130
    %v147 = vmul.f32 %v146, 0.6931472
    %v148 = vlog2.pop %v131
    %v149 = vmul.f32 %v148, 0.6931472
    %v150 = vlog2.pop %v132
    %v151 = vmul.f32 %v150, 0.6931472
    %v152 = vlog2.pop %v133
    %v153 = vmul.f32 %v152, 0.6931472
    %v154 = vmul.f32 %v147, -2.0
    %v155 = vmul.f32 %v149, -2.0
    %v156 = vmul.f32 %v151, -2.0
    %v157 = vmul.f32 %v153, -2.0
    %v158 = vrsqrt.pop %v154
    %v159 = vmul.f32 %v158, %v154
    %v160 = vmul.f32 %v159, %v158
    %v161 = vmul.f32 0.5, %v160
    %v162 = vsub.f32 1.5, %v161
    %v163 = vmul.f32 %v158, %v162
    %v164 = vmul.f32 %v154, %v163
    %vm165 = vcmp.eq.f32.partialorder %v154, inf
    %v166 = vsel %vm165, %v154, %v164
    %vm167 = vcmp.eq.f32.partialorder %v154, 0.0
    %v168 = vand.u32 %v154, 2147483648
    %v169 = vsel %vm167, %v168, %v166
    %v170 = vrsqrt.pop %v155
    %v171 = vmul.f32 %v170, %v155
    %v172 = vmul.f32 %v171, %v170
    %v173 = vmul.f32 0.5, %v172
    %v174 = vsub.f32 1.5, %v173
    %v175 = vmul.f32 %v170, %v174
    %v176 = vmul.f32 %v155, %v175
    %vm177 = vcmp.eq.f32.partialorder %v155, inf
    %v178 = vsel %vm177, %v155, %v176
    %vm179 = vcmp.eq.f32.partialorder %v155, 0.0
    %v180 = vand.u32 %v155, 2147483648
    %v181 = vsel %vm179, %v180, %v178
    %v182 = vrsqrt.pop %v156
    %v183 = vmul.f32 %v182, %v156
    %v184 = vmul.f32 %v183, %v182
    %v185 = vmul.f32 0.5, %v184
    %v186 = vsub.f32 1.5, %v185
    %v187 = vmul.f32 %v182, %v186
    %v188 = vmul.f32 %v156, %v187
    %vm189 = vcmp.eq.f32.partialorder %v156, inf
    %v190 = vsel %vm189, %v156, %v188
    %vm191 = vcmp.eq.f32.partialorder %v156, 0.0
    %v192 = vand.u32 %v156, 2147483648
    %v193 = vsel %vm191, %v192, %v190
    %v194 = vrsqrt.pop %v157
    %v195 = vmul.f32 %v194, %v157
    %v196 = vmul.f32 %v195, %v194
    %v197 = vmul.f32 0.5, %v196
    %v198 = vsub.f32 1.5, %v197
    %v199 = vmul.f32 %v194, %v198
    %v200 = vmul.f32 %v157, %v199
    %vm201 = vcmp.eq.f32.partialorder %v157, inf
    %v202 = vsel %vm201, %v157, %v200
    %vm203 = vcmp.eq.f32.partialorder %v157, 0.0
    %v204 = vand.u32 %v157, 2147483648
    %v205 = vsel %vm203, %v204, %v202
    %v206 = vmul.f32 %v142, 6.2831855
    %v207 = vmul.f32 %v143, 6.2831855
    %v208 = vmul.f32 %v144, 6.2831855
    %v209 = vmul.f32 %v145, 6.2831855
    %v210 = vand.u32 2147483647, %v206
    %vm211 = vcmp.le.f32.partialorder %v210, 0.7853982
    %vm212 = vcmp.lt.s32.totalorder %v206, 0
    %v213 = vand.u32 %v206, 2139095040
    %v214 = vshrl.u32 %v213, 23
    %v215 = vsub.s32 %v214, 127
    %v216 = vand.u32 2147483647, %v206
    %v217 = vand.u32 %v216, 8388607
    %v218 = vor.u32 %v217, 8388608
    %v219 = vsub.s32 0, %v218
    %v220 = vadd.s32 %v215, 1
    %vm221 = vcmp.gt.s32.totalorder %v220, 0
    %v222 = vsel %vm221, %v220, 0
    %v223 = vshrl.u32 %v222, 5
    %v224 = vand.u32 %v222, 31
    %v225 = vsub.s32 32, %v224
    %v226 = vshrl.u32 683565275, %v225
    %v227 = vshll.u32 683565275, %v224
    %v228 = vshrl.u32 2475754826, %v225
    %v229 = vor.u32 %v227, %v228
    %v230 = vshll.u32 2475754826, %v224
    %v231 = vshrl.u32 2131351028, %v225
    %v232 = vor.u32 %v230, %v231
    %v233 = vshll.u32 2131351028, %v224
    %v234 = vshrl.u32 2102212464, %v225
    %v235 = vor.u32 %v233, %v234
    %v236 = vshll.u32 2102212464, %v224
    %v237 = vshrl.u32 920167782, %v225
    %v238 = vor.u32 %v236, %v237
    %v239 = vshll.u32 920167782, %v224
    %v240 = vshrl.u32 1326507024, %v225
    %v241 = vor.u32 %v239, %v240
    %vm242 = vcmp.lt.s32.totalorder %v223, 1
    %vm243 = vcmp.lt.s32.totalorder %v223, 2
    %vm244 = vcmp.lt.s32.totalorder %v223, 3
    %vm245 = vcmp.lt.s32.totalorder %v223, 4
    %v246 = vsel %vm242, %v226, %v229
    %v247 = vsel %vm245, %v235, 2102212464
    %v248 = vsel %vm244, %v232, %v247
    %v249 = vsel %vm243, %v246, %v248
    %v250 = vsel %vm242, %v229, %v232
    %v251 = vsel %vm245, %v238, 920167782
    %v252 = vsel %vm244, %v235, %v251
    %v253 = vsel %vm243, %v250, %v252
    %v254 = vsel %vm242, %v232, %v235
    %v255 = vsel %vm245, %v241, 1326507024
    %v256 = vsel %vm244, %v238, %v255
    %v257 = vsel %vm243, %v254, %v256
    %v258 = vshll.u32 %v218, 8
    %v259 = vand.u32 %v258, 65535
    %v260 = vshrl.u32 %v258, 16
    %v261 = vand.u32 %v257, 65535
    %v262 = vshrl.u32 %v257, 16
    %v263 = vmul.u32 %v259, %v261
    %v264 = vmul.u32 %v259, %v262
    %v265 = vmul.u32 %v260, %v261
    %v266 = vmul.u32 %v260, %v262
    %v267 = vshll.u32 %v264, 16
    %v268 = vshrl.u32 %v264, 16
    %v269 = vshll.u32 %v265, 16
    %v270 = vshrl.u32 %v265, 16
    %vm271 = vc.u32 %v263, %v267
    %v272 = vsel %vm271, 1, 0
    %v273 = vadd.s32 %v263, %v267
    %v274 = vadd.s32 %v266, %v272
    %vm275 = vc.u32 %v273, %v269
    %v276 = vsel %vm275, 1, 0
    %v277 = vadd.s32 %v273, %v269
    %v278 = vadd.s32 %v274, %v276
    %v279 = vadd.s32 %v278, %v268
    %v280 = vadd.s32 %v279, %v270
    %v281 = vand.u32 %v258, 65535
    %v282 = vshrl.u32 %v258, 16
    %v283 = vand.u32 %v253, 65535
    %v284 = vshrl.u32 %v253, 16
    %v285 = vmul.u32 %v281, %v283
    %v286 = vmul.u32 %v281, %v284
    %v287 = vmul.u32 %v282, %v283
    %v288 = vmul.u32 %v282, %v284
    %v289 = vshll.u32 %v286, 16
    %v290 = vshrl.u32 %v286, 16
    %v291 = vshll.u32 %v287, 16
    %v292 = vshrl.u32 %v287, 16
    %vm293 = vc.u32 %v285, %v289
    %v294 = vsel %vm293, 1, 0
    %v295 = vadd.s32 %v285, %v289
    %v296 = vadd.s32 %v288, %v294
    %vm297 = vc.u32 %v295, %v291
    %v298 = vsel %vm297, 1, 0
    %v299 = vadd.s32 %v295, %v291
    %v300 = vadd.s32 %v296, %v298
    %v301 = vadd.s32 %v300, %v290
    %v302 = vadd.s32 %v301, %v292
    %v303 = vmul.u32 %v258, %v249
    %v304 = vadd.s32 %v280, %v299
    %vm305 = vc.u32 %v280, %v299
    %v306 = vadd.s32 %v302, 1
    %v307 = vsel %vm305, %v306, %v302
    %v308 = vadd.s32 %v303, %v307
    %v309 = vadd.s32 %v308, 536870912
    %v310 = vshrl.u32 %v309, 30
    %v311 = vshll.u32 %v310, 30
    %v312 = vsub.s32 %v308, %v311
    %vm313 = vcmp.lt.s32.totalorder %v312, 0
    %v314 = vsub.s32 0, %v312
    %v315 = vsel %vm313, %v314, %v312
    %v316 = vclz %v315
    %v317 = vsub.s32 %v316, 2
    %vm318 = vcmp.gt.s32.totalorder 0, %v317
    %v319 = vsel %vm318, 0, %v317
    %v320 = vsub.s32 32, %v319
    %v321 = vshll.u32 %v312, %v319
    %v322 = vshrl.u32 %v304, %v320
    %v323 = vor.u32 %v321, %v322
    %v324 = vsub.s32 4294967266, %v319
    %v325 = vadd.s32 %v324, 127
    %v326 = vshll.u32 %v325, 23
    %v327 = vor.u32 4788187, %v326
    %v328 = vand.u32 2147483647, %v327
    %v330 = vcvt.s32.f32 %v323
    %v331 = vmul.f32 %v330, %v328
    %v332 = vxor.u32 %v331, 2147483648
    %v333 = vsel %vm212, %v332, %v331
    %v334 = vsub.s32 4, %v310
    %v335 = vsel %vm212, %v334, %v310
    %v336 = vsel %vm211, %v206, %v333
    %v337 = vsel %vm211, 0, %v335
    %v338 = vmul.f32 %v336, %v336
    %v339 = vmul.f32 %v338, -0.001358992
    %v340 = vadd.f32 %v339, 0.041655596
    %v341 = vmul.f32 %v338, %v340
    %v342 = vadd.f32 %v341, -0.4999988
    %v343 = vmul.f32 %v338, %v342
    %v344 = vadd.f32 1.0, %v343
    %v345 = vmul.f32 %v336, %v336
    %v346 = vmul.f32 %v345, -0.00019511016
    %v347 = vadd.f32 %v346, 0.008332121
    %v348 = vmul.f32 %v345, %v347
    %v349 = vadd.f32 %v348, -0.16666654
    %v350 = vmul.f32 %v345, %v349
    %v351 = vadd.f32 %v350, 1.0
    %v352 = vmul.f32 %v351, %v336
    %vm353 = vweird.f32 %v206
    %v354 = vand.u32 %v337, 3
    %vm355 = vcmp.lt.s32.totalorder %v354, 2
    %vm356 = vcmp.eq.s32.totalorder %v354, 0
    %v357 = vxor.u32 %v352, 2147483648
    %v358 = vsel %vm356, %v344, %v357
    %vm359 = vcmp.eq.s32.totalorder %v354, 2
    %v360 = vxor.u32 %v344, 2147483648
    %v361 = vsel %vm359, %v360, %v352
    %v362 = vsel %vm355, %v358, %v361
    %v363 = vsel %vm353, nan, %v362
    %v364 = vand.u32 2147483647, %v207
    %vm365 = vcmp.le.f32.partialorder %v364, 0.7853982
    %vm366 = vcmp.lt.s32.totalorder %v207, 0
    %v367 = vand.u32 %v207, 2139095040
    %v368 = vshrl.u32 %v367, 23
    %v369 = vsub.s32 %v368, 127
    %v370 = vand.u32 2147483647, %v207
    %v371 = vand.u32 %v370, 8388607
    %v372 = vor.u32 %v371, 8388608
    %v373 = vsub.s32 0, %v372
    %v374 = vadd.s32 %v369, 1
    %vm375 = vcmp.gt.s32.totalorder %v374, 0
    %v376 = vsel %vm375, %v374, 0
    %v377 = vshrl.u32 %v376, 5
    %v378 = vand.u32 %v376, 31
    %v379 = vsub.s32 32, %v378
    %v380 = vshrl.u32 683565275, %v379
    %v381 = vshll.u32 683565275, %v378
    %v382 = vshrl.u32 2475754826, %v379
    %v383 = vor.u32 %v381, %v382
    %v384 = vshll.u32 2475754826, %v378
    %v385 = vshrl.u32 2131351028, %v379
    %v386 = vor.u32 %v384, %v385
    %v387 = vshll.u32 2131351028, %v378
    %v388 = vshrl.u32 2102212464, %v379
    %v389 = vor.u32 %v387, %v388
    %v390 = vshll.u32 2102212464, %v378
    %v391 = vshrl.u32 920167782, %v379
    %v392 = vor.u32 %v390, %v391
    %v393 = vshll.u32 920167782, %v378
    %v394 = vshrl.u32 1326507024, %v379
    %v395 = vor.u32 %v393, %v394
    %vm396 = vcmp.lt.s32.totalorder %v377, 1
    %vm397 = vcmp.lt.s32.totalorder %v377, 2
    %vm398 = vcmp.lt.s32.totalorder %v377, 3
    %vm399 = vcmp.lt.s32.totalorder %v377, 4
    %v400 = vsel %vm396, %v380, %v383
    %v401 = vsel %vm399, %v389, 2102212464
    %v402 = vsel %vm398, %v386, %v401
    %v403 = vsel %vm397, %v400, %v402
    %v404 = vsel %vm396, %v383, %v386
    %v405 = vsel %vm399, %v392, 920167782
    %v406 = vsel %vm398, %v389, %v405
    %v407 = vsel %vm397, %v404, %v406
    %v408 = vsel %vm396, %v386, %v389
    %v409 = vsel %vm399, %v395, 1326507024
    %v410 = vsel %vm398, %v392, %v409
    %v411 = vsel %vm397, %v408, %v410
    %v412 = vshll.u32 %v372, 8
    %v413 = vand.u32 %v412, 65535
    %v414 = vshrl.u32 %v412, 16
    %v415 = vand.u32 %v411, 65535
    %v416 = vshrl.u32 %v411, 16
    %v417 = vmul.u32 %v413, %v415
    %v418 = vmul.u32 %v413, %v416
    %v419 = vmul.u32 %v414, %v415
    %v420 = vmul.u32 %v414, %v416
    %v421 = vshll.u32 %v418, 16
    %v422 = vshrl.u32 %v418, 16
    %v423 = vshll.u32 %v419, 16
    %v424 = vshrl.u32 %v419, 16
    %vm425 = vc.u32 %v417, %v421
    %v426 = vsel %vm425, 1, 0
    %v427 = vadd.s32 %v417, %v421
    %v428 = vadd.s32 %v420, %v426
    %vm429 = vc.u32 %v427, %v423
    %v430 = vsel %vm429, 1, 0
    %v431 = vadd.s32 %v427, %v423
    %v432 = vadd.s32 %v428, %v430
    %v433 = vadd.s32 %v432, %v422
    %v434 = vadd.s32 %v433, %v424
    %v435 = vand.u32 %v412, 65535
    %v436 = vshrl.u32 %v412, 16
    %v437 = vand.u32 %v407, 65535
    %v438 = vshrl.u32 %v407, 16
    %v439 = vmul.u32 %v435, %v437
    %v440 = vmul.u32 %v435, %v438
    %v441 = vmul.u32 %v436, %v437
    %v442 = vmul.u32 %v436, %v438
    %v443 = vshll.u32 %v440, 16
    %v444 = vshrl.u32 %v440, 16
    %v445 = vshll.u32 %v441, 16
    %v446 = vshrl.u32 %v441, 16
    %vm447 = vc.u32 %v439, %v443
    %v448 = vsel %vm447, 1, 0
    %v449 = vadd.s32 %v439, %v443
    %v450 = vadd.s32 %v442, %v448
    %vm451 = vc.u32 %v449, %v445
    %v452 = vsel %vm451, 1, 0
    %v453 = vadd.s32 %v449, %v445
    %v454 = vadd.s32 %v450, %v452
    %v455 = vadd.s32 %v454, %v444
    %v456 = vadd.s32 %v455, %v446
    %v457 = vmul.u32 %v412, %v403
    %v458 = vadd.s32 %v434, %v453
    %vm459 = vc.u32 %v434, %v453
    %v460 = vadd.s32 %v456, 1
    %v461 = vsel %vm459, %v460, %v456
    %v462 = vadd.s32 %v457, %v461
    %v463 = vadd.s32 %v462, 536870912
    %v464 = vshrl.u32 %v463, 30
    %v465 = vshll.u32 %v464, 30
    %v466 = vsub.s32 %v462, %v465
    %vm467 = vcmp.lt.s32.totalorder %v466, 0
    %v468 = vsub.s32 0, %v466
    %v469 = vsel %vm467, %v468, %v466
    %v470 = vclz %v469
    %v471 = vsub.s32 %v470, 2
    %vm472 = vcmp.gt.s32.totalorder 0, %v471
    %v473 = vsel %vm472, 0, %v471
    %v474 = vsub.s32 32, %v473
    %v475 = vshll.u32 %v466, %v473
    %v476 = vshrl.u32 %v458, %v474
    %v477 = vor.u32 %v475, %v476
    %v478 = vsub.s32 4294967266, %v473
    %v479 = vadd.s32 %v478, 127
    %v480 = vshll.u32 %v479, 23
    %v481 = vor.u32 4788187, %v480
    %v482 = vand.u32 2147483647, %v481
    %v484 = vcvt.s32.f32 %v477
    %v485 = vmul.f32 %v484, %v482
    %v486 = vxor.u32 %v485, 2147483648
    %v487 = vsel %vm366, %v486, %v485
    %v488 = vsub.s32 4, %v464
    %v489 = vsel %vm366, %v488, %v464
    %v490 = vsel %vm365, %v207, %v487
    %v491 = vsel %vm365, 0, %v489
    %v492 = vmul.f32 %v490, %v490
    %v493 = vmul.f32 %v492, -0.001358992
    %v494 = vadd.f32 %v493, 0.041655596
    %v495 = vmul.f32 %v492, %v494
    %v496 = vadd.f32 %v495, -0.4999988
    %v497 = vmul.f32 %v492, %v496
    %v498 = vadd.f32 1.0, %v497
    %v499 = vmul.f32 %v490, %v490
    %v500 = vmul.f32 %v499, -0.00019511016
    %v501 = vadd.f32 %v500, 0.008332121
    %v502 = vmul.f32 %v499, %v501
    %v503 = vadd.f32 %v502, -0.16666654
    %v504 = vmul.f32 %v499, %v503
    %v505 = vadd.f32 %v504, 1.0
    %v506 = vmul.f32 %v505, %v490
    %vm507 = vweird.f32 %v207
    %v508 = vand.u32 %v491, 3
    %vm509 = vcmp.lt.s32.totalorder %v508, 2
    %vm510 = vcmp.eq.s32.totalorder %v508, 0
    %v511 = vxor.u32 %v506, 2147483648
    %v512 = vsel %vm510, %v498, %v511
    %vm513 = vcmp.eq.s32.totalorder %v508, 2
    %v514 = vxor.u32 %v498, 2147483648
    %v515 = vsel %vm513, %v514, %v506
    %v516 = vsel %vm509, %v512, %v515
    %v517 = vsel %vm507, nan, %v516
    %v518 = vand.u32 2147483647, %v208
    %vm519 = vcmp.le.f32.partialorder %v518, 0.7853982
    %vm520 = vcmp.lt.s32.totalorder %v208, 0
    %v521 = vand.u32 %v208, 2139095040
    %v522 = vshrl.u32 %v521, 23
    %v523 = vsub.s32 %v522, 127
    %v524 = vand.u32 2147483647, %v208
    %v525 = vand.u32 %v524, 8388607
    %v526 = vor.u32 %v525, 8388608
    %v527 = vsub.s32 0, %v526
    %v528 = vadd.s32 %v523, 1
    %vm529 = vcmp.gt.s32.totalorder %v528, 0
    %v530 = vsel %vm529, %v528, 0
    %v531 = vshrl.u32 %v530, 5
    %v532 = vand.u32 %v530, 31
    %v533 = vsub.s32 32, %v532
    %v534 = vshrl.u32 683565275, %v533
    %v535 = vshll.u32 683565275, %v532
    %v536 = vshrl.u32 2475754826, %v533
    %v537 = vor.u32 %v535, %v536
    %v538 = vshll.u32 2475754826, %v532
    %v539 = vshrl.u32 2131351028, %v533
    %v540 = vor.u32 %v538, %v539
    %v541 = vshll.u32 2131351028, %v532
    %v542 = vshrl.u32 2102212464, %v533
    %v543 = vor.u32 %v541, %v542
    %v544 = vshll.u32 2102212464, %v532
    %v545 = vshrl.u32 920167782, %v533
    %v546 = vor.u32 %v544, %v545
    %v547 = vshll.u32 920167782, %v532
    %v548 = vshrl.u32 1326507024, %v533
    %v549 = vor.u32 %v547, %v548
    %vm550 = vcmp.lt.s32.totalorder %v531, 1
    %vm551 = vcmp.lt.s32.totalorder %v531, 2
    %vm552 = vcmp.lt.s32.totalorder %v531, 3
    %vm553 = vcmp.lt.s32.totalorder %v531, 4
    %v554 = vsel %vm550, %v534, %v537
    %v555 = vsel %vm553, %v543, 2102212464
    %v556 = vsel %vm552, %v540, %v555
    %v557 = vsel %vm551, %v554, %v556
    %v558 = vsel %vm550, %v537, %v540
    %v559 = vsel %vm553, %v546, 920167782
    %v560 = vsel %vm552, %v543, %v559
    %v561 = vsel %vm551, %v558, %v560
    %v562 = vsel %vm550, %v540, %v543
    %v563 = vsel %vm553, %v549, 1326507024
    %v564 = vsel %vm552, %v546, %v563
    %v565 = vsel %vm551, %v562, %v564
    %v566 = vshll.u32 %v526, 8
    %v567 = vand.u32 %v566, 65535
    %v568 = vshrl.u32 %v566, 16
    %v569 = vand.u32 %v565, 65535
    %v570 = vshrl.u32 %v565, 16
    %v571 = vmul.u32 %v567, %v569
    %v572 = vmul.u32 %v567, %v570
    %v573 = vmul.u32 %v568, %v569
    %v574 = vmul.u32 %v568, %v570
    %v575 = vshll.u32 %v572, 16
    %v576 = vshrl.u32 %v572, 16
    %v577 = vshll.u32 %v573, 16
    %v578 = vshrl.u32 %v573, 16
    %vm579 = vc.u32 %v571, %v575
    %v580 = vsel %vm579, 1, 0
    %v581 = vadd.s32 %v571, %v575
    %v582 = vadd.s32 %v574, %v580
    %vm583 = vc.u32 %v581, %v577
    %v584 = vsel %vm583, 1, 0
    %v585 = vadd.s32 %v581, %v577
    %v586 = vadd.s32 %v582, %v584
    %v587 = vadd.s32 %v586, %v576
    %v588 = vadd.s32 %v587, %v578
    %v589 = vand.u32 %v566, 65535
    %v590 = vshrl.u32 %v566, 16
    %v591 = vand.u32 %v561, 65535
    %v592 = vshrl.u32 %v561, 16
    %v593 = vmul.u32 %v589, %v591
    %v594 = vmul.u32 %v589, %v592
    %v595 = vmul.u32 %v590, %v591
    %v596 = vmul.u32 %v590, %v592
    %v597 = vshll.u32 %v594, 16
    %v598 = vshrl.u32 %v594, 16
    %v599 = vshll.u32 %v595, 16
    %v600 = vshrl.u32 %v595, 16
    %vm601 = vc.u32 %v593, %v597
    %v602 = vsel %vm601, 1, 0
    %v603 = vadd.s32 %v593, %v597
    %v604 = vadd.s32 %v596, %v602
    %vm605 = vc.u32 %v603, %v599
    %v606 = vsel %vm605, 1, 0
    %v607 = vadd.s32 %v603, %v599
    %v608 = vadd.s32 %v604, %v606
    %v609 = vadd.s32 %v608, %v598
    %v610 = vadd.s32 %v609, %v600
    %v611 = vmul.u32 %v566, %v557
    %v612 = vadd.s32 %v588, %v607
    %vm613 = vc.u32 %v588, %v607
    %v614 = vadd.s32 %v610, 1
    %v615 = vsel %vm613, %v614, %v610
    %v616 = vadd.s32 %v611, %v615
    %v617 = vadd.s32 %v616, 536870912
    %v618 = vshrl.u32 %v617, 30
    %v619 = vshll.u32 %v618, 30
    %v620 = vsub.s32 %v616, %v619
    %vm621 = vcmp.lt.s32.totalorder %v620, 0
    %v622 = vsub.s32 0, %v620
    %v623 = vsel %vm621, %v622, %v620
    %v624 = vclz %v623
    %v625 = vsub.s32 %v624, 2
    %vm626 = vcmp.gt.s32.totalorder 0, %v625
    %v627 = vsel %vm626, 0, %v625
    %v628 = vsub.s32 32, %v627
    %v629 = vshll.u32 %v620, %v627
    %v630 = vshrl.u32 %v612, %v628
    %v631 = vor.u32 %v629, %v630
    %v632 = vsub.s32 4294967266, %v627
    %v633 = vadd.s32 %v632, 127
    %v634 = vshll.u32 %v633, 23
    %v635 = vor.u32 4788187, %v634
    %v636 = vand.u32 2147483647, %v635
    %v638 = vcvt.s32.f32 %v631
    %v639 = vmul.f32 %v638, %v636
    %v640 = vxor.u32 %v639, 2147483648
    %v641 = vsel %vm520, %v640, %v639
    %v642 = vsub.s32 4, %v618
    %v643 = vsel %vm520, %v642, %v618
    %v644 = vsel %vm519, %v208, %v641
    %v645 = vsel %vm519, 0, %v643
    %v646 = vmul.f32 %v644, %v644
    %v647 = vmul.f32 %v646, -0.001358992
    %v648 = vadd.f32 %v647, 0.041655596
    %v649 = vmul.f32 %v646, %v648
    %v650 = vadd.f32 %v649, -0.4999988
    %v651 = vmul.f32 %v646, %v650
    %v652 = vadd.f32 1.0, %v651
    %v653 = vmul.f32 %v644, %v644
    %v654 = vmul.f32 %v653, -0.00019511016
    %v655 = vadd.f32 %v654, 0.008332121
    %v656 = vmul.f32 %v653, %v655
    %v657 = vadd.f32 %v656, -0.16666654
    %v658 = vmul.f32 %v653, %v657
    %v659 = vadd.f32 %v658, 1.0
    %v660 = vmul.f32 %v659, %v644
    %vm661 = vweird.f32 %v208
    %v662 = vand.u32 %v645, 3
    %vm663 = vcmp.lt.s32.totalorder %v662, 2
    %vm664 = vcmp.eq.s32.totalorder %v662, 0
    %v665 = vxor.u32 %v660, 2147483648
    %v666 = vsel %vm664, %v652, %v665
    %vm667 = vcmp.eq.s32.totalorder %v662, 2
    %v668 = vxor.u32 %v652, 2147483648
    %v669 = vsel %vm667, %v668, %v660
    %v670 = vsel %vm663, %v666, %v669
    %v671 = vsel %vm661, nan, %v670
    %v672 = vand.u32 2147483647, %v209
    %vm673 = vcmp.le.f32.partialorder %v672, 0.7853982
    %vm674 = vcmp.lt.s32.totalorder %v209, 0
    %v675 = vand.u32 %v209, 2139095040
    %v676 = vshrl.u32 %v675, 23
    %v677 = vsub.s32 %v676, 127
    %v678 = vand.u32 2147483647, %v209
    %v679 = vand.u32 %v678, 8388607
    %v680 = vor.u32 %v679, 8388608
    %v681 = vsub.s32 0, %v680
    %v682 = vadd.s32 %v677, 1
    %vm683 = vcmp.gt.s32.totalorder %v682, 0
    %v684 = vsel %vm683, %v682, 0
    %v685 = vshrl.u32 %v684, 5
    %v686 = vand.u32 %v684, 31
    %v687 = vsub.s32 32, %v686
    %v688 = vshrl.u32 683565275, %v687
    %v689 = vshll.u32 683565275, %v686
    %v690 = vshrl.u32 2475754826, %v687
    %v691 = vor.u32 %v689, %v690
    %v692 = vshll.u32 2475754826, %v686
    %v693 = vshrl.u32 2131351028, %v687
    %v694 = vor.u32 %v692, %v693
    %v695 = vshll.u32 2131351028, %v686
    %v696 = vshrl.u32 2102212464, %v687
    %v697 = vor.u32 %v695, %v696
    %v698 = vshll.u32 2102212464, %v686
    %v699 = vshrl.u32 920167782, %v687
    %v700 = vor.u32 %v698, %v699
    %v701 = vshll.u32 920167782, %v686
    %v702 = vshrl.u32 1326507024, %v687
    %v703 = vor.u32 %v701, %v702
    %vm704 = vcmp.lt.s32.totalorder %v685, 1
    %vm705 = vcmp.lt.s32.totalorder %v685, 2
    %vm706 = vcmp.lt.s32.totalorder %v685, 3
    %vm707 = vcmp.lt.s32.totalorder %v685, 4
    %v708 = vsel %vm704, %v688, %v691
    %v709 = vsel %vm707, %v697, 2102212464
    %v710 = vsel %vm706, %v694, %v709
    %v711 = vsel %vm705, %v708, %v710
    %v712 = vsel %vm704, %v691, %v694
    %v713 = vsel %vm707, %v700, 920167782
    %v714 = vsel %vm706, %v697, %v713
    %v715 = vsel %vm705, %v712, %v714
    %v716 = vsel %vm704, %v694, %v697
    %v717 = vsel %vm707, %v703, 1326507024
    %v718 = vsel %vm706, %v700, %v717
    %v719 = vsel %vm705, %v716, %v718
    %v720 = vshll.u32 %v680, 8
    %v721 = vand.u32 %v720, 65535
    %v722 = vshrl.u32 %v720, 16
    %v723 = vand.u32 %v719, 65535
    %v724 = vshrl.u32 %v719, 16
    %v725 = vmul.u32 %v721, %v723
    %v726 = vmul.u32 %v721, %v724
    %v727 = vmul.u32 %v722, %v723
    %v728 = vmul.u32 %v722, %v724
    %v729 = vshll.u32 %v726, 16
    %v730 = vshrl.u32 %v726, 16
    %v731 = vshll.u32 %v727, 16
    %v732 = vshrl.u32 %v727, 16
    %vm733 = vc.u32 %v725, %v729
    %v734 = vsel %vm733, 1, 0
    %v735 = vadd.s32 %v725, %v729
    %v736 = vadd.s32 %v728, %v734
    %vm737 = vc.u32 %v735, %v731
    %v738 = vsel %vm737, 1, 0
    %v739 = vadd.s32 %v735, %v731
    %v740 = vadd.s32 %v736, %v738
    %v741 = vadd.s32 %v740, %v730
    %v742 = vadd.s32 %v741, %v732
    %v743 = vand.u32 %v720, 65535
    %v744 = vshrl.u32 %v720, 16
    %v745 = vand.u32 %v715, 65535
    %v746 = vshrl.u32 %v715, 16
    %v747 = vmul.u32 %v743, %v745
    %v748 = vmul.u32 %v743, %v746
    %v749 = vmul.u32 %v744, %v745
    %v750 = vmul.u32 %v744, %v746
    %v751 = vshll.u32 %v748, 16
    %v752 = vshrl.u32 %v748, 16
    %v753 = vshll.u32 %v749, 16
    %v754 = vshrl.u32 %v749, 16
    %vm755 = vc.u32 %v747, %v751
    %v756 = vsel %vm755, 1, 0
    %v757 = vadd.s32 %v747, %v751
    %v758 = vadd.s32 %v750, %v756
    %vm759 = vc.u32 %v757, %v753
    %v760 = vsel %vm759, 1, 0
    %v761 = vadd.s32 %v757, %v753
    %v762 = vadd.s32 %v758, %v760
    %v763 = vadd.s32 %v762, %v752
    %v764 = vadd.s32 %v763, %v754
    %v765 = vmul.u32 %v720, %v711
    %v766 = vadd.s32 %v742, %v761
    %vm767 = vc.u32 %v742, %v761
    %v768 = vadd.s32 %v764, 1
    %v769 = vsel %vm767, %v768, %v764
    %v770 = vadd.s32 %v765, %v769
    %v771 = vadd.s32 %v770, 536870912
    %v772 = vshrl.u32 %v771, 30
    %v773 = vshll.u32 %v772, 30
    %v774 = vsub.s32 %v770, %v773
    %vm775 = vcmp.lt.s32.totalorder %v774, 0
    %v776 = vsub.s32 0, %v774
    %v777 = vsel %vm775, %v776, %v774
    %v778 = vclz %v777
    %v779 = vsub.s32 %v778, 2
    %vm780 = vcmp.gt.s32.totalorder 0, %v779
    %v781 = vsel %vm780, 0, %v779
    %v782 = vsub.s32 32, %v781
    %v783 = vshll.u32 %v774, %v781
    %v784 = vshrl.u32 %v766, %v782
    %v785 = vor.u32 %v783, %v784
    %v786 = vsub.s32 4294967266, %v781
    %v787 = vadd.s32 %v786, 127
    %v788 = vshll.u32 %v787, 23
    %v789 = vor.u32 4788187, %v788
    %v790 = vand.u32 2147483647, %v789
    %v792 = vcvt.s32.f32 %v785
    %v793 = vmul.f32 %v792, %v790
    %v794 = vxor.u32 %v793, 2147483648
    %v795 = vsel %vm674, %v794, %v793
    %v796 = vsub.s32 4, %v772
    %v797 = vsel %vm674, %v796, %v772
    %v798 = vsel %vm673, %v209, %v795
    %v799 = vsel %vm673, 0, %v797
    %v800 = vmul.f32 %v798, %v798
    %v801 = vmul.f32 %v800, -0.001358992
    %v802 = vadd.f32 %v801, 0.041655596
    %v803 = vmul.f32 %v800, %v802
    %v804 = vadd.f32 %v803, -0.4999988
    %v805 = vmul.f32 %v800, %v804
    %v806 = vadd.f32 1.0, %v805
    %v807 = vmul.f32 %v798, %v798
    %v808 = vmul.f32 %v807, -0.00019511016
    %v809 = vadd.f32 %v808, 0.008332121
    %v810 = vmul.f32 %v807, %v809
    %v811 = vadd.f32 %v810, -0.16666654
    %v812 = vmul.f32 %v807, %v811
    %v813 = vadd.f32 %v812, 1.0
    %v814 = vmul.f32 %v813, %v798
    %vm815 = vweird.f32 %v209
    %v816 = vand.u32 %v799, 3
    %vm817 = vcmp.lt.s32.totalorder %v816, 2
    %vm818 = vcmp.eq.s32.totalorder %v816, 0
    %v819 = vxor.u32 %v814, 2147483648
    %v820 = vsel %vm818, %v806, %v819
    %vm821 = vcmp.eq.s32.totalorder %v816, 2
    %v822 = vxor.u32 %v806, 2147483648
    %v823 = vsel %vm821, %v822, %v814
    %v824 = vsel %vm817, %v820, %v823
    %v825 = vsel %vm815, nan, %v824
    %v826 = vmul.f32 %v169, %v363
    %v827 = vmul.f32 %v181, %v517
    %v828 = vmul.f32 %v193, %v671
    %v829 = vmul.f32 %v205, %v825
    %v830 = vand.u32 2147483647, %v206
    %vm831 = vcmp.le.f32.partialorder %v830, 0.7853982
    %vm832 = vcmp.lt.s32.totalorder %v206, 0
    %v833 = vand.u32 %v206, 2139095040
    %v834 = vshrl.u32 %v833, 23
    %v835 = vsub.s32 %v834, 127
    %v836 = vand.u32 2147483647, %v206
    %v837 = vand.u32 %v836, 8388607
    %v838 = vor.u32 %v837, 8388608
    %v839 = vsub.s32 0, %v838
    %v840 = vadd.s32 %v835, 1
    %vm841 = vcmp.gt.s32.totalorder %v840, 0
    %v842 = vsel %vm841, %v840, 0
    %v843 = vshrl.u32 %v842, 5
    %v844 = vand.u32 %v842, 31
    %v845 = vsub.s32 32, %v844
    %v846 = vshrl.u32 683565275, %v845
    %v847 = vshll.u32 683565275, %v844
    %v848 = vshrl.u32 2475754826, %v845
    %v849 = vor.u32 %v847, %v848
    %v850 = vshll.u32 2475754826, %v844
    %v851 = vshrl.u32 2131351028, %v845
    %v852 = vor.u32 %v850, %v851
    %v853 = vshll.u32 2131351028, %v844
    %v854 = vshrl.u32 2102212464, %v845
    %v855 = vor.u32 %v853, %v854
    %v856 = vshll.u32 2102212464, %v844
    %v857 = vshrl.u32 920167782, %v845
    %v858 = vor.u32 %v856, %v857
    %v859 = vshll.u32 920167782, %v844
    %v860 = vshrl.u32 1326507024, %v845
    %v861 = vor.u32 %v859, %v860
    %vm862 = vcmp.lt.s32.totalorder %v843, 1
    %vm863 = vcmp.lt.s32.totalorder %v843, 2
    %vm864 = vcmp.lt.s32.totalorder %v843, 3
    %vm865 = vcmp.lt.s32.totalorder %v843, 4
    %v866 = vsel %vm862, %v846, %v849
    %v867 = vsel %vm865, %v855, 2102212464
    %v868 = vsel %vm864, %v852, %v867
    %v869 = vsel %vm863, %v866, %v868
    %v870 = vsel %vm862, %v849, %v852
    %v871 = vsel %vm865, %v858, 920167782
    %v872 = vsel %vm864, %v855, %v871
    %v873 = vsel %vm863, %v870, %v872
    %v874 = vsel %vm862, %v852, %v855
    %v875 = vsel %vm865, %v861, 1326507024
    %v876 = vsel %vm864, %v858, %v875
    %v877 = vsel %vm863, %v874, %v876
    %v878 = vshll.u32 %v838, 8
    %v879 = vand.u32 %v878, 65535
    %v880 = vshrl.u32 %v878, 16
    %v881 = vand.u32 %v877, 65535
    %v882 = vshrl.u32 %v877, 16
    %v883 = vmul.u32 %v879, %v881
    %v884 = vmul.u32 %v879, %v882
    %v885 = vmul.u32 %v880, %v881
    %v886 = vmul.u32 %v880, %v882
    %v887 = vshll.u32 %v884, 16
    %v888 = vshrl.u32 %v884, 16
    %v889 = vshll.u32 %v885, 16
    %v890 = vshrl.u32 %v885, 16
    %vm891 = vc.u32 %v883, %v887
    %v892 = vsel %vm891, 1, 0
    %v893 = vadd.s32 %v883, %v887
    %v894 = vadd.s32 %v886, %v892
    %vm895 = vc.u32 %v893, %v889
    %v896 = vsel %vm895, 1, 0
    %v897 = vadd.s32 %v893, %v889
    %v898 = vadd.s32 %v894, %v896
    %v899 = vadd.s32 %v898, %v888
    %v900 = vadd.s32 %v899, %v890
    %v901 = vand.u32 %v878, 65535
    %v902 = vshrl.u32 %v878, 16
    %v903 = vand.u32 %v873, 65535
    %v904 = vshrl.u32 %v873, 16
    %v905 = vmul.u32 %v901, %v903
    %v906 = vmul.u32 %v901, %v904
    %v907 = vmul.u32 %v902, %v903
    %v908 = vmul.u32 %v902, %v904
    %v909 = vshll.u32 %v906, 16
    %v910 = vshrl.u32 %v906, 16
    %v911 = vshll.u32 %v907, 16
    %v912 = vshrl.u32 %v907, 16
    %vm913 = vc.u32 %v905, %v909
    %v914 = vsel %vm913, 1, 0
    %v915 = vadd.s32 %v905, %v909
    %v916 = vadd.s32 %v908, %v914
    %vm917 = vc.u32 %v915, %v911
    %v918 = vsel %vm917, 1, 0
    %v919 = vadd.s32 %v915, %v911
    %v920 = vadd.s32 %v916, %v918
    %v921 = vadd.s32 %v920, %v910
    %v922 = vadd.s32 %v921, %v912
    %v923 = vmul.u32 %v878, %v869
    %v924 = vadd.s32 %v900, %v919
    %vm925 = vc.u32 %v900, %v919
    %v926 = vadd.s32 %v922, 1
    %v927 = vsel %vm925, %v926, %v922
    %v928 = vadd.s32 %v923, %v927
    %v929 = vadd.s32 %v928, 536870912
    %v930 = vshrl.u32 %v929, 30
    %v931 = vshll.u32 %v930, 30
    %v932 = vsub.s32 %v928, %v931
    %vm933 = vcmp.lt.s32.totalorder %v932, 0
    %v934 = vsub.s32 0, %v932
    %v935 = vsel %vm933, %v934, %v932
    %v936 = vclz %v935
    %v937 = vsub.s32 %v936, 2
    %vm938 = vcmp.gt.s32.totalorder 0, %v937
    %v939 = vsel %vm938, 0, %v937
    %v940 = vsub.s32 32, %v939
    %v941 = vshll.u32 %v932, %v939
    %v942 = vshrl.u32 %v924, %v940
    %v943 = vor.u32 %v941, %v942
    %v944 = vsub.s32 4294967266, %v939
    %v945 = vadd.s32 %v944, 127
    %v946 = vshll.u32 %v945, 23
    %v947 = vor.u32 4788187, %v946
    %v948 = vand.u32 2147483647, %v947
    %v950 = vcvt.s32.f32 %v943
    %v951 = vmul.f32 %v950, %v948
    %v952 = vxor.u32 %v951, 2147483648
    %v953 = vsel %vm832, %v952, %v951
    %v954 = vsub.s32 4, %v930
    %v955 = vsel %vm832, %v954, %v930
    %v956 = vsel %vm831, %v206, %v953
    %v957 = vsel %vm831, 0, %v955
    %v958 = vmul.f32 %v956, %v956
    %v959 = vmul.f32 %v958, -0.001358992
    %v960 = vadd.f32 %v959, 0.041655596
    %v961 = vmul.f32 %v958, %v960
    %v962 = vadd.f32 %v961, -0.4999988
    %v963 = vmul.f32 %v958, %v962
    %v964 = vadd.f32 1.0, %v963
    %v965 = vmul.f32 %v956, %v956
    %v966 = vmul.f32 %v965, -0.00019511016
    %v967 = vadd.f32 %v966, 0.008332121
    %v968 = vmul.f32 %v965, %v967
    %v969 = vadd.f32 %v968, -0.16666654
    %v970 = vmul.f32 %v965, %v969
    %v971 = vadd.f32 %v970, 1.0
    %v972 = vmul.f32 %v971, %v956
    %vm973 = vweird.f32 %v206
    %v974 = vadd.s32 %v957, 3
    %v975 = vand.u32 %v974, 3
    %vm976 = vcmp.lt.s32.totalorder %v975, 2
    %vm977 = vcmp.eq.s32.totalorder %v975, 0
    %v978 = vxor.u32 %v972, 2147483648
    %v979 = vsel %vm977, %v964, %v978
    %vm980 = vcmp.eq.s32.totalorder %v975, 2
    %v981 = vxor.u32 %v964, 2147483648
    %v982 = vsel %vm980, %v981, %v972
    %v983 = vsel %vm976, %v979, %v982
    %v984 = vsel %vm973, nan, %v983
    %v985 = vand.u32 2147483647, %v207
    %vm986 = vcmp.le.f32.partialorder %v985, 0.7853982
    %vm987 = vcmp.lt.s32.totalorder %v207, 0
    %v988 = vand.u32 %v207, 2139095040
    %v989 = vshrl.u32 %v988, 23
    %v990 = vsub.s32 %v989, 127
    %v991 = vand.u32 2147483647, %v207
    %v992 = vand.u32 %v991, 8388607
    %v993 = vor.u32 %v992, 8388608
    %v994 = vsub.s32 0, %v993
    %v995 = vadd.s32 %v990, 1
    %vm996 = vcmp.gt.s32.totalorder %v995, 0
    %v997 = vsel %vm996, %v995, 0
    %v998 = vshrl.u32 %v997, 5
    %v999 = vand.u32 %v997, 31
    %v1000 = vsub.s32 32, %v999
    %v1001 = vshrl.u32 683565275, %v1000
    %v1002 = vshll.u32 683565275, %v999
    %v1003 = vshrl.u32 2475754826, %v1000
    %v1004 = vor.u32 %v1002, %v1003
    %v1005 = vshll.u32 2475754826, %v999
    %v1006 = vshrl.u32 2131351028, %v1000
    %v1007 = vor.u32 %v1005, %v1006
    %v1008 = vshll.u32 2131351028, %v999
    %v1009 = vshrl.u32 2102212464, %v1000
    %v1010 = vor.u32 %v1008, %v1009
    %v1011 = vshll.u32 2102212464, %v999
    %v1012 = vshrl.u32 920167782, %v1000
    %v1013 = vor.u32 %v1011, %v1012
    %v1014 = vshll.u32 920167782, %v999
    %v1015 = vshrl.u32 1326507024, %v1000
    %v1016 = vor.u32 %v1014, %v1015
    %vm1017 = vcmp.lt.s32.totalorder %v998, 1
    %vm1018 = vcmp.lt.s32.totalorder %v998, 2
    %vm1019 = vcmp.lt.s32.totalorder %v998, 3
    %vm1020 = vcmp.lt.s32.totalorder %v998, 4
    %v1021 = vsel %vm1017, %v1001, %v1004
    %v1022 = vsel %vm1020, %v1010, 2102212464
    %v1023 = vsel %vm1019, %v1007, %v1022
    %v1024 = vsel %vm1018, %v1021, %v1023
    %v1025 = vsel %vm1017, %v1004, %v1007
    %v1026 = vsel %vm1020, %v1013, 920167782
    %v1027 = vsel %vm1019, %v1010, %v1026
    %v1028 = vsel %vm1018, %v1025, %v1027
    %v1029 = vsel %vm1017, %v1007, %v1010
    %v1030 = vsel %vm1020, %v1016, 1326507024
    %v1031 = vsel %vm1019, %v1013, %v1030
    %v1032 = vsel %vm1018, %v1029, %v1031
    %v1033 = vshll.u32 %v993, 8
    %v1034 = vand.u32 %v1033, 65535
    %v1035 = vshrl.u32 %v1033, 16
    %v1036 = vand.u32 %v1032, 65535
    %v1037 = vshrl.u32 %v1032, 16
    %v1038 = vmul.u32 %v1034, %v1036
    %v1039 = vmul.u32 %v1034, %v1037
    %v1040 = vmul.u32 %v1035, %v1036
    %v1041 = vmul.u32 %v1035, %v1037
    %v1042 = vshll.u32 %v1039, 16
    %v1043 = vshrl.u32 %v1039, 16
    %v1044 = vshll.u32 %v1040, 16
    %v1045 = vshrl.u32 %v1040, 16
    %vm1046 = vc.u32 %v1038, %v1042
    %v1047 = vsel %vm1046, 1, 0
    %v1048 = vadd.s32 %v1038, %v1042
    %v1049 = vadd.s32 %v1041, %v1047
    %vm1050 = vc.u32 %v1048, %v1044
    %v1051 = vsel %vm1050, 1, 0
    %v1052 = vadd.s32 %v1048, %v1044
    %v1053 = vadd.s32 %v1049, %v1051
    %v1054 = vadd.s32 %v1053, %v1043
    %v1055 = vadd.s32 %v1054, %v1045
    %v1056 = vand.u32 %v1033, 65535
    %v1057 = vshrl.u32 %v1033, 16
    %v1058 = vand.u32 %v1028, 65535
    %v1059 = vshrl.u32 %v1028, 16
    %v1060 = vmul.u32 %v1056, %v1058
    %v1061 = vmul.u32 %v1056, %v1059
    %v1062 = vmul.u32 %v1057, %v1058
    %v1063 = vmul.u32 %v1057, %v1059
    %v1064 = vshll.u32 %v1061, 16
    %v1065 = vshrl.u32 %v1061, 16
    %v1066 = vshll.u32 %v1062, 16
    %v1067 = vshrl.u32 %v1062, 16
    %vm1068 = vc.u32 %v1060, %v1064
    %v1069 = vsel %vm1068, 1, 0
    %v1070 = vadd.s32 %v1060, %v1064
    %v1071 = vadd.s32 %v1063, %v1069
    %vm1072 = vc.u32 %v1070, %v1066
    %v1073 = vsel %vm1072, 1, 0
    %v1074 = vadd.s32 %v1070, %v1066
    %v1075 = vadd.s32 %v1071, %v1073
    %v1076 = vadd.s32 %v1075, %v1065
    %v1077 = vadd.s32 %v1076, %v1067
    %v1078 = vmul.u32 %v1033, %v1024
    %v1079 = vadd.s32 %v1055, %v1074
    %vm1080 = vc.u32 %v1055, %v1074
    %v1081 = vadd.s32 %v1077, 1
    %v1082 = vsel %vm1080, %v1081, %v1077
    %v1083 = vadd.s32 %v1078, %v1082
    %v1084 = vadd.s32 %v1083, 536870912
    %v1085 = vshrl.u32 %v1084, 30
    %v1086 = vshll.u32 %v1085, 30
    %v1087 = vsub.s32 %v1083, %v1086
    %vm1088 = vcmp.lt.s32.totalorder %v1087, 0
    %v1089 = vsub.s32 0, %v1087
    %v1090 = vsel %vm1088, %v1089, %v1087
    %v1091 = vclz %v1090
    %v1092 = vsub.s32 %v1091, 2
    %vm1093 = vcmp.gt.s32.totalorder 0, %v1092
    %v1094 = vsel %vm1093, 0, %v1092
    %v1095 = vsub.s32 32, %v1094
    %v1096 = vshll.u32 %v1087, %v1094
    %v1097 = vshrl.u32 %v1079, %v1095
    %v1098 = vor.u32 %v1096, %v1097
    %v1099 = vsub.s32 4294967266, %v1094
    %v1100 = vadd.s32 %v1099, 127
    %v1101 = vshll.u32 %v1100, 23
    %v1102 = vor.u32 4788187, %v1101
    %v1103 = vand.u32 2147483647, %v1102
    %v1105 = vcvt.s32.f32 %v1098
    %v1106 = vmul.f32 %v1105, %v1103
    %v1107 = vxor.u32 %v1106, 2147483648
    %v1108 = vsel %vm987, %v1107, %v1106
    %v1109 = vsub.s32 4, %v1085
    %v1110 = vsel %vm987, %v1109, %v1085
    %v1111 = vsel %vm986, %v207, %v1108
    %v1112 = vsel %vm986, 0, %v1110
    %v1113 = vmul.f32 %v1111, %v1111
    %v1114 = vmul.f32 %v1113, -0.001358992
    %v1115 = vadd.f32 %v1114, 0.041655596
    %v1116 = vmul.f32 %v1113, %v1115
    %v1117 = vadd.f32 %v1116, -0.4999988
    %v1118 = vmul.f32 %v1113, %v1117
    %v1119 = vadd.f32 1.0, %v1118
    %v1120 = vmul.f32 %v1111, %v1111
    %v1121 = vmul.f32 %v1120, -0.00019511016
    %v1122 = vadd.f32 %v1121, 0.008332121
    %v1123 = vmul.f32 %v1120, %v1122
    %v1124 = vadd.f32 %v1123, -0.16666654
    %v1125 = vmul.f32 %v1120, %v1124
    %v1126 = vadd.f32 %v1125, 1.0
    %v1127 = vmul.f32 %v1126, %v1111
    %vm1128 = vweird.f32 %v207
    %v1129 = vadd.s32 %v1112, 3
    %v1130 = vand.u32 %v1129, 3
    %vm1131 = vcmp.lt.s32.totalorder %v1130, 2
    %vm1132 = vcmp.eq.s32.totalorder %v1130, 0
    %v1133 = vxor.u32 %v1127, 2147483648
    %v1134 = vsel %vm1132, %v1119, %v1133
    %vm1135 = vcmp.eq.s32.totalorder %v1130, 2
    %v1136 = vxor.u32 %v1119, 2147483648
    %v1137 = vsel %vm1135, %v1136, %v1127
    %v1138 = vsel %vm1131, %v1134, %v1137
    %v1139 = vsel %vm1128, nan, %v1138
    %v1140 = vand.u32 2147483647, %v208
    %vm1141 = vcmp.le.f32.partialorder %v1140, 0.7853982
    %vm1142 = vcmp.lt.s32.totalorder %v208, 0
    %v1143 = vand.u32 %v208, 2139095040
    %v1144 = vshrl.u32 %v1143, 23
    %v1145 = vsub.s32 %v1144, 127
    %v1146 = vand.u32 2147483647, %v208
    %v1147 = vand.u32 %v1146, 8388607
    %v1148 = vor.u32 %v1147, 8388608
    %v1149 = vsub.s32 0, %v1148
    %v1150 = vadd.s32 %v1145, 1
    %vm1151 = vcmp.gt.s32.totalorder %v1150, 0
    %v1152 = vsel %vm1151, %v1150, 0
    %v1153 = vshrl.u32 %v1152, 5
    %v1154 = vand.u32 %v1152, 31
    %v1155 = vsub.s32 32, %v1154
    %v1156 = vshrl.u32 683565275, %v1155
    %v1157 = vshll.u32 683565275, %v1154
    %v1158 = vshrl.u32 2475754826, %v1155
    %v1159 = vor.u32 %v1157, %v1158
    %v1160 = vshll.u32 2475754826, %v1154
    %v1161 = vshrl.u32 2131351028, %v1155
    %v1162 = vor.u32 %v1160, %v1161
    %v1163 = vshll.u32 2131351028, %v1154
    %v1164 = vshrl.u32 2102212464, %v1155
    %v1165 = vor.u32 %v1163, %v1164
    %v1166 = vshll.u32 2102212464, %v1154
    %v1167 = vshrl.u32 920167782, %v1155
    %v1168 = vor.u32 %v1166, %v1167
    %v1169 = vshll.u32 920167782, %v1154
    %v1170 = vshrl.u32 1326507024, %v1155
    %v1171 = vor.u32 %v1169, %v1170
    %vm1172 = vcmp.lt.s32.totalorder %v1153, 1
    %vm1173 = vcmp.lt.s32.totalorder %v1153, 2
    %vm1174 = vcmp.lt.s32.totalorder %v1153, 3
    %vm1175 = vcmp.lt.s32.totalorder %v1153, 4
    %v1176 = vsel %vm1172, %v1156, %v1159
    %v1177 = vsel %vm1175, %v1165, 2102212464
    %v1178 = vsel %vm1174, %v1162, %v1177
    %v1179 = vsel %vm1173, %v1176, %v1178
    %v1180 = vsel %vm1172, %v1159, %v1162
    %v1181 = vsel %vm1175, %v1168, 920167782
    %v1182 = vsel %vm1174, %v1165, %v1181
    %v1183 = vsel %vm1173, %v1180, %v1182
    %v1184 = vsel %vm1172, %v1162, %v1165
    %v1185 = vsel %vm1175, %v1171, 1326507024
    %v1186 = vsel %vm1174, %v1168, %v1185
    %v1187 = vsel %vm1173, %v1184, %v1186
    %v1188 = vshll.u32 %v1148, 8
    %v1189 = vand.u32 %v1188, 65535
    %v1190 = vshrl.u32 %v1188, 16
    %v1191 = vand.u32 %v1187, 65535
    %v1192 = vshrl.u32 %v1187, 16
    %v1193 = vmul.u32 %v1189, %v1191
    %v1194 = vmul.u32 %v1189, %v1192
    %v1195 = vmul.u32 %v1190, %v1191
    %v1196 = vmul.u32 %v1190, %v1192
    %v1197 = vshll.u32 %v1194, 16
    %v1198 = vshrl.u32 %v1194, 16
    %v1199 = vshll.u32 %v1195, 16
    %v1200 = vshrl.u32 %v1195, 16
    %vm1201 = vc.u32 %v1193, %v1197
    %v1202 = vsel %vm1201, 1, 0
    %v1203 = vadd.s32 %v1193, %v1197
    %v1204 = vadd.s32 %v1196, %v1202
    %vm1205 = vc.u32 %v1203, %v1199
    %v1206 = vsel %vm1205, 1, 0
    %v1207 = vadd.s32 %v1203, %v1199
    %v1208 = vadd.s32 %v1204, %v1206
    %v1209 = vadd.s32 %v1208, %v1198
    %v1210 = vadd.s32 %v1209, %v1200
    %v1211 = vand.u32 %v1188, 65535
    %v1212 = vshrl.u32 %v1188, 16
    %v1213 = vand.u32 %v1183, 65535
    %v1214 = vshrl.u32 %v1183, 16
    %v1215 = vmul.u32 %v1211, %v1213
    %v1216 = vmul.u32 %v1211, %v1214
    %v1217 = vmul.u32 %v1212, %v1213
    %v1218 = vmul.u32 %v1212, %v1214
    %v1219 = vshll.u32 %v1216, 16
    %v1220 = vshrl.u32 %v1216, 16
    %v1221 = vshll.u32 %v1217, 16
    %v1222 = vshrl.u32 %v1217, 16
    %vm1223 = vc.u32 %v1215, %v1219
    %v1224 = vsel %vm1223, 1, 0
    %v1225 = vadd.s32 %v1215, %v1219
    %v1226 = vadd.s32 %v1218, %v1224
    %vm1227 = vc.u32 %v1225, %v1221
    %v1228 = vsel %vm1227, 1, 0
    %v1229 = vadd.s32 %v1225, %v1221
    %v1230 = vadd.s32 %v1226, %v1228
    %v1231 = vadd.s32 %v1230, %v1220
    %v1232 = vadd.s32 %v1231, %v1222
    %v1233 = vmul.u32 %v1188, %v1179
    %v1234 = vadd.s32 %v1210, %v1229
    %vm1235 = vc.u32 %v1210, %v1229
    %v1236 = vadd.s32 %v1232, 1
    %v1237 = vsel %vm1235, %v1236, %v1232
    %v1238 = vadd.s32 %v1233, %v1237
    %v1239 = vadd.s32 %v1238, 536870912
    %v1240 = vshrl.u32 %v1239, 30
    %v1241 = vshll.u32 %v1240, 30
    %v1242 = vsub.s32 %v1238, %v1241
    %vm1243 = vcmp.lt.s32.totalorder %v1242, 0
    %v1244 = vsub.s32 0, %v1242
    %v1245 = vsel %vm1243, %v1244, %v1242
    %v1246 = vclz %v1245
    %v1247 = vsub.s32 %v1246, 2
    %vm1248 = vcmp.gt.s32.totalorder 0, %v1247
    %v1249 = vsel %vm1248, 0, %v1247
    %v1250 = vsub.s32 32, %v1249
    %v1251 = vshll.u32 %v1242, %v1249
    %v1252 = vshrl.u32 %v1234, %v1250
    %v1253 = vor.u32 %v1251, %v1252
    %v1254 = vsub.s32 4294967266, %v1249
    %v1255 = vadd.s32 %v1254, 127
    %v1256 = vshll.u32 %v1255, 23
    %v1257 = vor.u32 4788187, %v1256
    %v1258 = vand.u32 2147483647, %v1257
    %v1260 = vcvt.s32.f32 %v1253
    %v1261 = vmul.f32 %v1260, %v1258
    %v1262 = vxor.u32 %v1261, 2147483648
    %v1263 = vsel %vm1142, %v1262, %v1261
    %v1264 = vsub.s32 4, %v1240
    %v1265 = vsel %vm1142, %v1264, %v1240
    %v1266 = vsel %vm1141, %v208, %v1263
    %v1267 = vsel %vm1141, 0, %v1265
    %v1268 = vmul.f32 %v1266, %v1266
    %v1269 = vmul.f32 %v1268, -0.001358992
    %v1270 = vadd.f32 %v1269, 0.041655596
    %v1271 = vmul.f32 %v1268, %v1270
    %v1272 = vadd.f32 %v1271, -0.4999988
    %v1273 = vmul.f32 %v1268, %v1272
    %v1274 = vadd.f32 1.0, %v1273
    %v1275 = vmul.f32 %v1266, %v1266
    %v1276 = vmul.f32 %v1275, -0.00019511016
    %v1277 = vadd.f32 %v1276, 0.008332121
    %v1278 = vmul.f32 %v1275, %v1277
    %v1279 = vadd.f32 %v1278, -0.16666654
    %v1280 = vmul.f32 %v1275, %v1279
    %v1281 = vadd.f32 %v1280, 1.0
    %v1282 = vmul.f32 %v1281, %v1266
    %vm1283 = vweird.f32 %v208
    %v1284 = vadd.s32 %v1267, 3
    %v1285 = vand.u32 %v1284, 3
    %vm1286 = vcmp.lt.s32.totalorder %v1285, 2
    %vm1287 = vcmp.eq.s32.totalorder %v1285, 0
    %v1288 = vxor.u32 %v1282, 2147483648
    %v1289 = vsel %vm1287, %v1274, %v1288
    %vm1290 = vcmp.eq.s32.totalorder %v1285, 2
    %v1291 = vxor.u32 %v1274, 2147483648
    %v1292 = vsel %vm1290, %v1291, %v1282
    %v1293 = vsel %vm1286, %v1289, %v1292
    %v1294 = vsel %vm1283, nan, %v1293
    %v1295 = vand.u32 2147483647, %v209
    %vm1296 = vcmp.le.f32.partialorder %v1295, 0.7853982
    %vm1297 = vcmp.lt.s32.totalorder %v209, 0
    %v1298 = vand.u32 %v209, 2139095040
    %v1299 = vshrl.u32 %v1298, 23
    %v1300 = vsub.s32 %v1299, 127
    %v1301 = vand.u32 2147483647, %v209
    %v1302 = vand.u32 %v1301, 8388607
    %v1303 = vor.u32 %v1302, 8388608
    %v1304 = vsub.s32 0, %v1303
    %v1305 = vadd.s32 %v1300, 1
    %vm1306 = vcmp.gt.s32.totalorder %v1305, 0
    %v1307 = vsel %vm1306, %v1305, 0
    %v1308 = vshrl.u32 %v1307, 5
    %v1309 = vand.u32 %v1307, 31
    %v1310 = vsub.s32 32, %v1309
    %v1311 = vshrl.u32 683565275, %v1310
    %v1312 = vshll.u32 683565275, %v1309
    %v1313 = vshrl.u32 2475754826, %v1310
    %v1314 = vor.u32 %v1312, %v1313
    %v1315 = vshll.u32 2475754826, %v1309
    %v1316 = vshrl.u32 2131351028, %v1310
    %v1317 = vor.u32 %v1315, %v1316
    %v1318 = vshll.u32 2131351028, %v1309
    %v1319 = vshrl.u32 2102212464, %v1310
    %v1320 = vor.u32 %v1318, %v1319
    %v1321 = vshll.u32 2102212464, %v1309
    %v1322 = vshrl.u32 920167782, %v1310
    %v1323 = vor.u32 %v1321, %v1322
    %v1324 = vshll.u32 920167782, %v1309
    %v1325 = vshrl.u32 1326507024, %v1310
    %v1326 = vor.u32 %v1324, %v1325
    %vm1327 = vcmp.lt.s32.totalorder %v1308, 1
    %vm1328 = vcmp.lt.s32.totalorder %v1308, 2
    %vm1329 = vcmp.lt.s32.totalorder %v1308, 3
    %vm1330 = vcmp.lt.s32.totalorder %v1308, 4
    %v1331 = vsel %vm1327, %v1311, %v1314
    %v1332 = vsel %vm1330, %v1320, 2102212464
    %v1333 = vsel %vm1329, %v1317, %v1332
    %v1334 = vsel %vm1328, %v1331, %v1333
    %v1335 = vsel %vm1327, %v1314, %v1317
    %v1336 = vsel %vm1330, %v1323, 920167782
    %v1337 = vsel %vm1329, %v1320, %v1336
    %v1338 = vsel %vm1328, %v1335, %v1337
    %v1339 = vsel %vm1327, %v1317, %v1320
    %v1340 = vsel %vm1330, %v1326, 1326507024
    %v1341 = vsel %vm1329, %v1323, %v1340
    %v1342 = vsel %vm1328, %v1339, %v1341
    %v1343 = vshll.u32 %v1303, 8
    %v1344 = vand.u32 %v1343, 65535
    %v1345 = vshrl.u32 %v1343, 16
    %v1346 = vand.u32 %v1342, 65535
    %v1347 = vshrl.u32 %v1342, 16
    %v1348 = vmul.u32 %v1344, %v1346
    %v1349 = vmul.u32 %v1344, %v1347
    %v1350 = vmul.u32 %v1345, %v1346
    %v1351 = vmul.u32 %v1345, %v1347
    %v1352 = vshll.u32 %v1349, 16
    %v1353 = vshrl.u32 %v1349, 16
    %v1354 = vshll.u32 %v1350, 16
    %v1355 = vshrl.u32 %v1350, 16
    %vm1356 = vc.u32 %v1348, %v1352
    %v1357 = vsel %vm1356, 1, 0
    %v1358 = vadd.s32 %v1348, %v1352
    %v1359 = vadd.s32 %v1351, %v1357
    %vm1360 = vc.u32 %v1358, %v1354
    %v1361 = vsel %vm1360, 1, 0
    %v1362 = vadd.s32 %v1358, %v1354
    %v1363 = vadd.s32 %v1359, %v1361
    %v1364 = vadd.s32 %v1363, %v1353
    %v1365 = vadd.s32 %v1364, %v1355
    %v1366 = vand.u32 %v1343, 65535
    %v1367 = vshrl.u32 %v1343, 16
    %v1368 = vand.u32 %v1338, 65535
    %v1369 = vshrl.u32 %v1338, 16
    %v1370 = vmul.u32 %v1366, %v1368
    %v1371 = vmul.u32 %v1366, %v1369
    %v1372 = vmul.u32 %v1367, %v1368
    %v1373 = vmul.u32 %v1367, %v1369
    %v1374 = vshll.u32 %v1371, 16
    %v1375 = vshrl.u32 %v1371, 16
    %v1376 = vshll.u32 %v1372, 16
    %v1377 = vshrl.u32 %v1372, 16
    %vm1378 = vc.u32 %v1370, %v1374
    %v1379 = vsel %vm1378, 1, 0
    %v1380 = vadd.s32 %v1370, %v1374
    %v1381 = vadd.s32 %v1373, %v1379
    %vm1382 = vc.u32 %v1380, %v1376
    %v1383 = vsel %vm1382, 1, 0
    %v1384 = vadd.s32 %v1380, %v1376
    %v1385 = vadd.s32 %v1381, %v1383
    %v1386 = vadd.s32 %v1385, %v1375
    %v1387 = vadd.s32 %v1386, %v1377
    %v1388 = vmul.u32 %v1343, %v1334
    %v1389 = vadd.s32 %v1365, %v1384
    %vm1390 = vc.u32 %v1365, %v1384
    %v1391 = vadd.s32 %v1387, 1
    %v1392 = vsel %vm1390, %v1391, %v1387
    %v1393 = vadd.s32 %v1388, %v1392
    %v1394 = vadd.s32 %v1393, 536870912
    %v1395 = vshrl.u32 %v1394, 30
    %v1396 = vshll.u32 %v1395, 30
    %v1397 = vsub.s32 %v1393, %v1396
    %vm1398 = vcmp.lt.s32.totalorder %v1397, 0
    %v1399 = vsub.s32 0, %v1397
    %v1400 = vsel %vm1398, %v1399, %v1397
    %v1401 = vclz %v1400
    %v1402 = vsub.s32 %v1401, 2
    %vm1403 = vcmp.gt.s32.totalorder 0, %v1402
    %v1404 = vsel %vm1403, 0, %v1402
    %v1405 = vsub.s32 32, %v1404
    %v1406 = vshll.u32 %v1397, %v1404
    %v1407 = vshrl.u32 %v1389, %v1405
    %v1408 = vor.u32 %v1406, %v1407
    %v1409 = vsub.s32 4294967266, %v1404
    %v1410 = vadd.s32 %v1409, 127
    %v1411 = vshll.u32 %v1410, 23
    %v1412 = vor.u32 4788187, %v1411
    %v1413 = vand.u32 2147483647, %v1412
    %v1415 = vcvt.s32.f32 %v1408
    %v1416 = vmul.f32 %v1415, %v1413
    %v1417 = vxor.u32 %v1416, 2147483648
    %v1418 = vsel %vm1297, %v1417, %v1416
    %v1419 = vsub.s32 4, %v1395
    %v1420 = vsel %vm1297, %v1419, %v1395
    %v1421 = vsel %vm1296, %v209, %v1418
    %v1422 = vsel %vm1296, 0, %v1420
    %v1423 = vmul.f32 %v1421, %v1421
    %v1424 = vmul.f32 %v1423, -0.001358992
    %v1425 = vadd.f32 %v1424, 0.041655596
    %v1426 = vmul.f32 %v1423, %v1425
    %v1427 = vadd.f32 %v1426, -0.4999988
    %v1428 = vmul.f32 %v1423, %v1427
    %v1429 = vadd.f32 1.0, %v1428
    %v1430 = vmul.f32 %v1421, %v1421
    %v1431 = vmul.f32 %v1430, -0.00019511016
    %v1432 = vadd.f32 %v1431, 0.008332121
    %v1433 = vmul.f32 %v1430, %v1432
    %v1434 = vadd.f32 %v1433, -0.16666654
    %v1435 = vmul.f32 %v1430, %v1434
    %v1436 = vadd.f32 %v1435, 1.0
    %v1437 = vmul.f32 %v1436, %v1421
    %vm1438 = vweird.f32 %v209
    %v1439 = vadd.s32 %v1422, 3
    %v1440 = vand.u32 %v1439, 3
    %vm1441 = vcmp.lt.s32.totalorder %v1440, 2
    %vm1442 = vcmp.eq.s32.totalorder %v1440, 0
    %v1443 = vxor.u32 %v1437, 2147483648
    %v1444 = vsel %vm1442, %v1429, %v1443
    %vm1445 = vcmp.eq.s32.totalorder %v1440, 2
    %v1446 = vxor.u32 %v1429, 2147483648
    %v1447 = vsel %vm1445, %v1446, %v1437
    %v1448 = vsel %vm1441, %v1444, %v1447
    %v1449 = vsel %vm1438, nan, %v1448
    %v1450 = vmul.f32 %v169, %v984
    %v1451 = vmul.f32 %v181, %v1139
    %v1452 = vmul.f32 %v193, %v1294
    %v1453 = vmul.f32 %v205, %v1449
    %v1454 = vld [vmem:[#allocation4] sm:$0xff]
    %v1455 = vld [vmem:[#allocation4 + $0x8] sm:$0xff]
    %v1456 = vld [vmem:[#allocation4 + $0x10] sm:$0xff]
    %v1457 = vld [vmem:[#allocation4 + $0x18] sm:$0xff]
    %v1458 = vld [vmem:[#allocation4 + $0x20] sm:$0xff]
    %v1459 = vld [vmem:[#allocation4 + $0x28] sm:$0xff]
    %v1460 = vld [vmem:[#allocation4 + $0x30] sm:$0xff]
    %v1461 = vld [vmem:[#allocation4 + $0x38] sm:$0xff]
    %v1462 = vmul.f32 %v826, 0.1
    %v1463 = vmul.f32 %v827, 0.1
    %v1464 = vmul.f32 %v828, 0.1
    %v1465 = vmul.f32 %v829, 0.1
    %v1466 = vmul.f32 %v1450, 0.1
    %v1467 = vmul.f32 %v1451, 0.1
    %v1468 = vmul.f32 %v1452, 0.1
    %v1469 = vmul.f32 %v1453, 0.1
    %v1470 = vadd.f32 %v1454, %v1462
    %v1471 = vadd.f32 %v1455, %v1463
    %v1472 = vadd.f32 %v1456, %v1464
    %v1473 = vadd.f32 %v1457, %v1465
    %v1474 = vadd.f32 %v1458, %v1466
    %v1475 = vadd.f32 %v1459, %v1467
    %v1476 = vadd.f32 %v1460, %v1468
    %v1477 = vadd.f32 %v1461, %v1469
    %1478 = vst [vmem:[#allocation7] sm:$0xff] %v1470
    %1479 = vst [vmem:[#allocation7 + $0x8] sm:$0xff] %v1471
    %1480 = vst [vmem:[#allocation7 + $0x10] sm:$0xff] %v1472
    %1481 = vst [vmem:[#allocation7 + $0x18] sm:$0xff] %v1473
    %1482 = vst [vmem:[#allocation7 + $0x20] sm:$0xff] %v1474
    %1483 = vst [vmem:[#allocation7 + $0x28] sm:$0xff] %v1475
    %1484 = vst [vmem:[#allocation7 + $0x30] sm:$0xff] %v1476
    %1485 = vst [vmem:[#allocation7 + $0x38] sm:$0xff] %v1477
    // Predicated region
    $region10: #{tpu_custom_call.1} parent=1 // pred_check
      _
    $region11: #{tpu_custom_call.1} parent=1 // pred_check_branch
      %1487 = sbr.rel (0) target = $region13
    $region12: #{tpu_custom_call.1} parent=1 // pred_region
      %1489 = vsyncadd [#allocation6], 0
      %s1491 = sshll.u32 [#allocation7], 4
      %s1492 = int_to_ptr.vmem [resolvable:$true] %s1491
      %s1493 = sshll.u32 %s2, 4
      %s1494 = int_to_ptr.hbm [resolvable:$true] %s1493
      %1496 = dma.vmem_to_hbm [thread:$0]  %s1492, 1024, %s1494, [#allocation6]
    $region13: #{tpu_custom_call.1} parent=1 // pred_fallthru
      _
    // Predicated region
    $region14: #{tpu_custom_call.1} parent=1 // pred_check
      _
    $region15: #{tpu_custom_call.1} parent=1 // pred_check_branch
      %1498 = sbr.rel (0) target = $region17
    $region16: #{tpu_custom_call.1} parent=1 // pred_region
      %1500 = dma.done [#allocation6], 1024
    $region17: #{tpu_custom_call.1} parent=1 // pred_fallthru
      _
    %1501 = vsyncpa [#allocation5], 1
    %1502 = vsyncpa [#allocation6], 1

</llo_original>
